<compile_context>
chip_gen: v7x
topology: tpu7x:2x2x1
jax: 0.10.0
libtpu: 0.0.40
codegen_flags: <defaults>
</compile_context>

<pallas_src>
import functools

import jax
import jax.numpy as jnp
from jax.experimental import pallas as pl
from jax.experimental.pallas import tpu as pltpu


def _gc2d_kernel(x_ref, t_ref, acc_ref, *, width):
    """Accumulate 9 per-(sublane, lane) partial sums into acc_ref of shape (72, hw)."""
    step = pl.program_id(1)

    @pl.when(step == 0)
    def _init():
        acc_ref[...] = jnp.zeros(acc_ref.shape, acc_ref.dtype)

    bc_tile, hw = x_ref.shape
    groups = bc_tile // 8

    x = x_ref[...].astype(jnp.float32)
    t = t_ref[...].astype(jnp.float32)

    # ---- region term, sign-flipped (negated once in the wrapper) ----
    # torch.nn.BCELoss semantics: per-element logs clamped at -100.
    log_x = jnp.maximum(jnp.log(x), -100.0)
    log_1mx = jnp.maximum(jnp.log(1.0 - x), -100.0)
    bce_neg = log_1mx + t * (log_x - log_1mx)   # == t*log(x) + (1-t)*log(1-x)

    # ---- boundary term: neighbour values via lane rolls ----
    # roll(v, hw - k, axis=1)[p] == v[(p + k) mod hw]
    x_r1 = pltpu.roll(x, hw - 1, axis=1)        # x[h, w+1]
    x_rw = pltpu.roll(x, hw - width, axis=1)    # x[h+1, w]
    x_rw1 = pltpu.roll(x_rw, hw - 1, axis=1)    # x[h+1, w+1]
    t_r1 = pltpu.roll(t, hw - 1, axis=1)
    t_rw = pltpu.roll(t, hw - width, axis=1)
    t_rw1 = pltpu.roll(t_rw, hw - 1, axis=1)

    # Unmasked diffs/products: wrapped lane positions are zeroed by the
    # (lane-only) validity masks applied in the wrapper, after accumulation.
    t_hori = jnp.abs(t_r1 - t)
    t_vert = jnp.abs(t_rw - t)
    t_d1 = jnp.abs(t_rw1 - t)
    t_d2 = jnp.abs(t_rw - t_r1)
    i_hori = jnp.abs(x_r1 - x)
    i_vert = jnp.abs(x_rw - x)
    i_d1 = jnp.abs(x_rw1 - x)
    i_d2 = jnp.abs(x_rw - x_r1)

    def psum(q):
        # (bc_tile, hw) -> (8, hw): sublane-group reduce = plain vreg adds,
        # full-sublane aligned stores into the accumulator below.
        return q.reshape(groups, 8, hw).sum(axis=0)

    quantities = (
        bce_neg,
        i_vert * t_vert, t_vert,
        i_hori * t_hori, t_hori,
        i_d1 * t_d1, t_d1,
        i_d2 * t_d2, t_d2,
    )
    for k, q in enumerate(quantities):
        acc_ref[k * 8:(k + 1) * 8, :] += psum(q)


def _round_up8(n):
    return -(-n // 8) * 8


def _choose_tiling(bc, hw, itemsize, num_splits, bc_tile):
    """Per-generation VMEM-aware tiling over the BC axis."""
    try:
        vmem_cap = int(pltpu.get_tpu_info().vmem_capacity_bytes)
    except Exception:
        vmem_cap = 64 * 1024 * 1024          # conservative (v7x per-TC) fallback
    # ~40 MiB on v7x (64 MiB/TC), ~80 MiB on v5e/v6e (128 MiB).
    vmem_limit = min((vmem_cap * 5) // 8, 96 * 1024 * 1024)

    if num_splits is None:
        num_splits = 2 if bc >= 16 else 1    # 2 TC-shardable splits when worthwhile

    per_split = _round_up8(-(-bc // num_splits))
    if bc_tile is None:
        budget = (vmem_limit * 4) // 5
        # 2 inputs x 2 pipeline buffers in input dtype + ~12 live f32 temporaries.
        bytes_per_row = hw * (itemsize * 4 + 4 * 12)
        max_rows = max(8, ((budget // bytes_per_row) // 8) * 8)
        bc_tile = min(max_rows, per_split)
    bc_tile = max(8, (int(bc_tile) // 8) * 8)
    bc_tile = min(bc_tile, per_split)

    tiles_per_split = -(-bc // (num_splits * bc_tile))
    bc_padded = num_splits * tiles_per_split * bc_tile
    return num_splits, bc_tile, tiles_per_split, bc_padded, vmem_limit


def gc_2d_loss(inp, target, iou_prediction, *, lmda=1.0, num_splits=None, bc_tile=None):
    """Pallas implementation of GC_2D.forward (iou_prediction is unused, as in the reference)."""
    del iou_prediction  # unused by the PyTorch module's forward
    B, C, H, W = inp.shape
    bc, hw = B * C, H * W

    # Lane-dense layout: flatten spatial dims onto the lane axis; keep caller dtype.
    x2 = inp.reshape(bc, hw)
    t2 = target.reshape(bc, hw)

    num_splits, bc_tile, tiles_per_split, bc_padded, vmem_limit = _choose_tiling(
        bc, hw, x2.dtype.itemsize, num_splits, bc_tile)

    pad = bc_padded - bc
    if pad > 0:
        # x=1, t=1 padding contributes exactly zero to every accumulated quantity.
        x2 = jnp.pad(x2, ((0, pad), (0, 0)), constant_values=1.0)
        t2 = jnp.pad(t2, ((0, pad), (0, 0)), constant_values=1.0)

    kernel = functools.partial(_gc2d_kernel, width=W)
    in_map = lambda s, i: (s * tiles_per_split + i, 0)

    partials = pl.pallas_call(
        kernel,
        out_shape=jax.ShapeDtypeStruct((num_splits, 72, hw), jnp.float32),
        grid=(num_splits, tiles_per_split),
        in_specs=[
            pl.BlockSpec((bc_tile, hw), in_map),
            pl.BlockSpec((bc_tile, hw), in_map),
        ],
        # Per-split resident accumulator output (9 quantities x 8 sublanes x hw lanes).
        out_specs=pl.BlockSpec((None, 72, hw), lambda s, i: (s, 0, 0)),
        compiler_params=pltpu.CompilerParams(
            dimension_semantics=("parallel", "arbitrary"),
            vmem_limit_bytes=int(vmem_limit),
        ),
    )(x2, t2)

    # ---- finalize in the wrapper (cross-split reduce, masks, divisions, combine) ----
    parts = partials.sum(axis=0).reshape(9, 8, hw).sum(axis=1)   # (9, hw)

    idx = jnp.arange(hw)
    m_w = (idx % W != W - 1).astype(jnp.float32)      # horizontal neighbour valid
    m_h = (idx < (H - 1) * W).astype(jnp.float32)     # vertical neighbour valid
    m_hw = m_w * m_h

    region = -jnp.sum(parts[0]) / float(bc * hw)
    r_vert = jnp.sum(parts[1] * m_h) / jnp.sum(parts[2] * m_h)
    r_hori = jnp.sum(parts[3] * m_w) / jnp.sum(parts[4] * m_w)
    r_d1 = jnp.sum(parts[5] * m_hw) / jnp.sum(parts[6] * m_hw)
    r_d2 = jnp.sum(parts[7] * m_hw) / jnp.sum(parts[8] * m_hw)
    boundary = 1.0 - 0.25 * (r_vert + r_hori + r_d1 + r_d2)
    return lmda * region + boundary


def _reference(inp, target, lmda):
    # pure-JAX reference mirroring the PyTorch forward
    x = inp.astype(jnp.float32)
    t = target.astype(jnp.float32)
    log_x = jnp.maximum(jnp.log(x), -100.0)
    log_1mx = jnp.maximum(jnp.log(1.0 - x), -100.0)
    region = jnp.mean(-(t * log_x + (1.0 - t) * log_1mx))

    tv = jnp.abs(t[:, :, 1:, :] - t[:, :, :-1, :])
    iv = jnp.abs(x[:, :, 1:, :] - x[:, :, :-1, :])
    th = jnp.abs(t[:, :, :, 1:] - t[:, :, :, :-1])
    ih = jnp.abs(x[:, :, :, 1:] - x[:, :, :, :-1])
    td1 = jnp.abs(t[:, :, 1:, 1:] - t[:, :, :-1, :-1])
    id1 = jnp.abs(x[:, :, 1:, 1:] - x[:, :, :-1, :-1])
    td2 = jnp.abs(t[:, :, 1:, :-1] - t[:, :, :-1, 1:])
    id2 = jnp.abs(x[:, :, 1:, :-1] - x[:, :, :-1, 1:])
    boundary = 1.0 - (jnp.sum(iv * tv) / jnp.sum(tv)
                      + jnp.sum(ih * th) / jnp.sum(th)
                      + jnp.sum(id1 * td1) / jnp.sum(td1)
                      + jnp.sum(id2 * td2) / jnp.sum(td2)) / 4.0
    return lmda * region + boundary


if __name__ == "__main__":
    key = jax.random.PRNGKey(0)
    k1, k2, k3 = jax.random.split(key, 3)

    B, C, H, W = 4, 4, 16, 16
    lmda = 1.0

    # input must be a probability in (0,1) (BCELoss expects that)
    inp = jax.nn.sigmoid(jax.random.normal(k1, (B, C, H, W), jnp.float32))
    # target: soft labels in [0,1]
    target = jax.random.uniform(k2, (B, C, H, W), jnp.float32)
    # iou_prediction is accepted but unused by the forward pass
    iou_prediction = jax.random.uniform(k3, (B, 1), jnp.float32)

    ref = _reference(inp, target, lmda)

    # auto tiling: 2-way "parallel" split over BC
    out_auto = jax.block_until_ready(gc_2d_loss(inp, target, iou_prediction, lmda=lmda))
    # force a multi-step inner reduction on a single split (exercises accumulation)
    out_tiled = jax.block_until_ready(
        gc_2d_loss(inp, target, iou_prediction, lmda=lmda, num_splits=1, bc_tile=8))
    # awkward BC (12 rows -> padded to 16) exercises the tail-padding path
    out_tail = jax.block_until_ready(
        gc_2d_loss(inp[:3], target[:3], iou_prediction[:3], lmda=lmda, bc_tile=8))
    ref_tail = _reference(inp[:3], target[:3], lmda)

    assert jnp.allclose(out_auto, ref, rtol=1e-5, atol=1e-5), (out_auto, ref)
    assert jnp.allclose(out_tiled, ref, rtol=1e-5, atol=1e-5), (out_tiled, ref)
    assert jnp.allclose(out_tail, ref_tail, rtol=1e-5, atol=1e-5), (out_tail, ref_tail)

    print("KERNEL_OK")
</pallas_src>

<mosaic_0001>
module attributes {stable_mosaic.version = 11 : i64} {
  func.func @_gc2d_kernel(%arg0: i32, %arg1: i32, %arg2: memref<8x256xf32, #tpu.memory_space<vmem>>, %arg3: memref<8x256xf32, #tpu.memory_space<vmem>>, %arg4: memref<1x72x256xf32, #tpu.memory_space<vmem>>) attributes {dimension_semantics = [#tpu.dimension_semantics<parallel>, #tpu.dimension_semantics<arbitrary>], iteration_bounds = array<i64: 2, 1>, scalar_prefetch = 0 : i64, scratch_operands = 0 : i64, tpu.core_type = #tpu.core_type<tc>, window_params = [{transform_indices = @transform_0, window_bounds = array<i64: 8, 256>}, {transform_indices = @transform_1, window_bounds = array<i64: 8, 256>}, {transform_indices = @transform_2, window_bounds = array<i64: 1, 72, 256>}]} {
    %c0_i32 = arith.constant 0 : i32
    %0 = arith.cmpi eq, %arg1, %c0_i32 : i32
    %1 = arith.extui %0 : i1 to i32
    %c0_i32_0 = arith.constant 0 : i32
    %2 = arith.cmpi ne, %1, %c0_i32_0 : i32
    scf.if %2 {
      %cst_65 = arith.constant 0.000000e+00 : f32
      %114 = vector.broadcast %cst_65 : f32 to vector<72x256xf32>
      %c0_66 = arith.constant 0 : index
      %c0_67 = arith.constant 0 : index
      %c0_68 = arith.constant 0 : index
      %115 = vector.load %arg4[%c0_66, %c0_67, %c0_68] : memref<1x72x256xf32, #tpu.memory_space<vmem>>, vector<1x72x256xf32>
      %116 = vector.shape_cast %115 : vector<1x72x256xf32> to vector<72x256xf32>
      %117 = vector.shape_cast %114 : vector<72x256xf32> to vector<1x72x256xf32>
      tpu.vector_store %arg4[%c0_66, %c0_67, %c0_68], %117 {strides = array<i32>} : memref<1x72x256xf32, #tpu.memory_space<vmem>>, vector<1x72x256xf32>,
    } else {
    }
    %c0 = arith.constant 0 : index
    %c0_1 = arith.constant 0 : index
    %3 = vector.load %arg2[%c0, %c0_1] : memref<8x256xf32, #tpu.memory_space<vmem>>, vector<8x256xf32>
    %c0_2 = arith.constant 0 : index
    %c0_3 = arith.constant 0 : index
    %4 = vector.load %arg3[%c0_2, %c0_3] : memref<8x256xf32, #tpu.memory_space<vmem>>, vector<8x256xf32>
    %5 = math.log %3 : vector<8x256xf32>
    %cst = arith.constant -1.000000e+02 : f32
    %6 = vector.broadcast %cst : f32 to vector<8x256xf32>
    %7 = arith.maximumf %5, %6 : vector<8x256xf32>
    %cst_4 = arith.constant 1.000000e+00 : f32
    %8 = vector.broadcast %cst_4 : f32 to vector<8x256xf32>
    %9 = arith.subf %8, %3 : vector<8x256xf32>
    %10 = math.log %9 : vector<8x256xf32>
    %cst_5 = arith.constant -1.000000e+02 : f32
    %11 = vector.broadcast %cst_5 : f32 to vector<8x256xf32>
    %12 = arith.maximumf %10, %11 : vector<8x256xf32>
    %13 = arith.subf %7, %12 : vector<8x256xf32>
    %14 = arith.mulf %4, %13 : vector<8x256xf32>
    %15 = arith.addf %12, %14 : vector<8x256xf32>
    %c255_i32 = arith.constant 255 : i32
    %16 = tpu.dynamic_rotate %3 by %c255_i32 dim 1 : vector<8x256xf32>, i32 -> vector<8x256xf32>
    %c240_i32 = arith.constant 240 : i32
    %17 = tpu.dynamic_rotate %3 by %c240_i32 dim 1 : vector<8x256xf32>, i32 -> vector<8x256xf32>
    %c255_i32_6 = arith.constant 255 : i32
    %18 = tpu.dynamic_rotate %17 by %c255_i32_6 dim 1 : vector<8x256xf32>, i32 -> vector<8x256xf32>
    %c255_i32_7 = arith.constant 255 : i32
    %19 = tpu.dynamic_rotate %4 by %c255_i32_7 dim 1 : vector<8x256xf32>, i32 -> vector<8x256xf32>
    %c240_i32_8 = arith.constant 240 : i32
    %20 = tpu.dynamic_rotate %4 by %c240_i32_8 dim 1 : vector<8x256xf32>, i32 -> vector<8x256xf32>
    %c255_i32_9 = arith.constant 255 : i32
    %21 = tpu.dynamic_rotate %20 by %c255_i32_9 dim 1 : vector<8x256xf32>, i32 -> vector<8x256xf32>
    %22 = arith.subf %19, %4 : vector<8x256xf32>
    %23 = math.absf %22 : vector<8x256xf32>
    %24 = arith.subf %20, %4 : vector<8x256xf32>
    %25 = math.absf %24 : vector<8x256xf32>
    %26 = arith.subf %21, %4 : vector<8x256xf32>
    %27 = math.absf %26 : vector<8x256xf32>
    %28 = arith.subf %20, %19 : vector<8x256xf32>
    %29 = math.absf %28 : vector<8x256xf32>
    %30 = arith.subf %16, %3 : vector<8x256xf32>
    %31 = math.absf %30 : vector<8x256xf32>
    %32 = arith.subf %17, %3 : vector<8x256xf32>
    %33 = math.absf %32 : vector<8x256xf32>
    %34 = arith.subf %18, %3 : vector<8x256xf32>
    %35 = math.absf %34 : vector<8x256xf32>
    %36 = arith.subf %17, %16 : vector<8x256xf32>
    %37 = math.absf %36 : vector<8x256xf32>
    %38 = arith.mulf %33, %25 : vector<8x256xf32>
    %39 = arith.mulf %31, %23 : vector<8x256xf32>
    %40 = arith.mulf %35, %27 : vector<8x256xf32>
    %41 = arith.mulf %37, %29 : vector<8x256xf32>
    %c0_10 = arith.constant 0 : index
    %c0_11 = arith.constant 0 : index
    %c0_12 = arith.constant 0 : index
    %42 = vector.load %arg4[%c0_10, %c0_11, %c0_12] : memref<1x72x256xf32, #tpu.memory_space<vmem>>, vector<1x8x256xf32>
    %43 = vector.shape_cast %42 : vector<1x8x256xf32> to vector<8x256xf32>
    %44 = vector.shape_cast %15 : vector<8x256xf32> to vector<1x8x256xf32>
    %cst_13 = arith.constant dense<0.000000e+00> : vector<8x256xf32>
    %45 = vector.multi_reduction <add>, %44, %cst_13 [0] : vector<1x8x256xf32> to vector<8x256xf32>
    %46 = arith.addf %43, %45 : vector<8x256xf32>
    %c0_14 = arith.constant 0 : index
    %c0_15 = arith.constant 0 : index
    %c0_16 = arith.constant 0 : index
    %47 = vector.load %arg4[%c0_14, %c0_15, %c0_16] : memref<1x72x256xf32, #tpu.memory_space<vmem>>, vector<1x8x256xf32>
    %48 = vector.shape_cast %47 : vector<1x8x256xf32> to vector<8x256xf32>
    %49 = vector.shape_cast %46 : vector<8x256xf32> to vector<1x8x256xf32>
    tpu.vector_store %arg4[%c0_14, %c0_15, %c0_16], %49 {strides = array<i32>} : memref<1x72x256xf32, #tpu.memory_space<vmem>>, vector<1x8x256xf32>,
    %c0_17 = arith.constant 0 : index
    %c8 = arith.constant 8 : index
    %c0_18 = arith.constant 0 : index
    %50 = vector.load %arg4[%c0_17, %c8, %c0_18] : memref<1x72x256xf32, #tpu.memory_space<vmem>>, vector<1x8x256xf32>
    %51 = vector.shape_cast %50 : vector<1x8x256xf32> to vector<8x256xf32>
    %52 = vector.shape_cast %38 : vector<8x256xf32> to vector<1x8x256xf32>
    %cst_19 = arith.constant dense<0.000000e+00> : vector<8x256xf32>
    %53 = vector.multi_reduction <add>, %52, %cst_19 [0] : vector<1x8x256xf32> to vector<8x256xf32>
    %54 = arith.addf %51, %53 : vector<8x256xf32>
    %c0_20 = arith.constant 0 : index
    %c8_21 = arith.constant 8 : index
    %c0_22 = arith.constant 0 : index
    %55 = vector.load %arg4[%c0_20, %c8_21, %c0_22] : memref<1x72x256xf32, #tpu.memory_space<vmem>>, vector<1x8x256xf32>
    %56 = vector.shape_cast %55 : vector<1x8x256xf32> to vector<8x256xf32>
    %57 = vector.shape_cast %54 : vector<8x256xf32> to vector<1x8x256xf32>
    tpu.vector_store %arg4[%c0_20, %c8_21, %c0_22], %57 {strides = array<i32>} : memref<1x72x256xf32, #tpu.memory_space<vmem>>, vector<1x8x256xf32>,
    %c0_23 = arith.constant 0 : index
    %c16 = arith.constant 16 : index
    %c0_24 = arith.constant 0 : index
    %58 = vector.load %arg4[%c0_23, %c16, %c0_24] : memref<1x72x256xf32, #tpu.memory_space<vmem>>, vector<1x8x256xf32>
    %59 = vector.shape_cast %58 : vector<1x8x256xf32> to vector<8x256xf32>
    %60 = vector.shape_cast %25 : vector<8x256xf32> to vector<1x8x256xf32>
    %cst_25 = arith.constant dense<0.000000e+00> : vector<8x256xf32>
    %61 = vector.multi_reduction <add>, %60, %cst_25 [0] : vector<1x8x256xf32> to vector<8x256xf32>
    %62 = arith.addf %59, %61 : vector<8x256xf32>
    %c0_26 = arith.constant 0 : index
    %c16_27 = arith.constant 16 : index
    %c0_28 = arith.constant 0 : index
    %63 = vector.load %arg4[%c0_26, %c16_27, %c0_28] : memref<1x72x256xf32, #tpu.memory_space<vmem>>, vector<1x8x256xf32>
    %64 = vector.shape_cast %63 : vector<1x8x256xf32> to vector<8x256xf32>
    %65 = vector.shape_cast %62 : vector<8x256xf32> to vector<1x8x256xf32>
    tpu.vector_store %arg4[%c0_26, %c16_27, %c0_28], %65 {strides = array<i32>} : memref<1x72x256xf32, #tpu.memory_space<vmem>>, vector<1x8x256xf32>,
    %c0_29 = arith.constant 0 : index
    %c24 = arith.constant 24 : index
    %c0_30 = arith.constant 0 : index
    %66 = vector.load %arg4[%c0_29, %c24, %c0_30] : memref<1x72x256xf32, #tpu.memory_space<vmem>>, vector<1x8x256xf32>
    %67 = vector.shape_cast %66 : vector<1x8x256xf32> to vector<8x256xf32>
    %68 = vector.shape_cast %39 : vector<8x256xf32> to vector<1x8x256xf32>
    %cst_31 = arith.constant dense<0.000000e+00> : vector<8x256xf32>
    %69 = vector.multi_reduction <add>, %68, %cst_31 [0] : vector<1x8x256xf32> to vector<8x256xf32>
    %70 = arith.addf %67, %69 : vector<8x256xf32>
    %c0_32 = arith.constant 0 : index
    %c24_33 = arith.constant 24 : index
    %c0_34 = arith.constant 0 : index
    %71 = vector.load %arg4[%c0_32, %c24_33, %c0_34] : memref<1x72x256xf32, #tpu.memory_space<vmem>>, vector<1x8x256xf32>
    %72 = vector.shape_cast %71 : vector<1x8x256xf32> to vector<8x256xf32>
    %73 = vector.shape_cast %70 : vector<8x256xf32> to vector<1x8x256xf32>
    tpu.vector_store %arg4[%c0_32, %c24_33, %c0_34], %73 {strides = array<i32>} : memref<1x72x256xf32, #tpu.memory_space<vmem>>, vector<1x8x256xf32>,
    %c0_35 = arith.constant 0 : index
    %c32 = arith.constant 32 : index
    %c0_36 = arith.constant 0 : index
    %74 = vector.load %arg4[%c0_35, %c32, %c0_36] : memref<1x72x256xf32, #tpu.memory_space<vmem>>, vector<1x8x256xf32>
    %75 = vector.shape_cast %74 : vector<1x8x256xf32> to vector<8x256xf32>
    %76 = vector.shape_cast %23 : vector<8x256xf32> to vector<1x8x256xf32>
    %cst_37 = arith.constant dense<0.000000e+00> : vector<8x256xf32>
    %77 = vector.multi_reduction <add>, %76, %cst_37 [0] : vector<1x8x256xf32> to vector<8x256xf32>
    %78 = arith.addf %75, %77 : vector<8x256xf32>
    %c0_38 = arith.constant 0 : index
    %c32_39 = arith.constant 32 : index
    %c0_40 = arith.constant 0 : index
    %79 = vector.load %arg4[%c0_38, %c32_39, %c0_40] : memref<1x72x256xf32, #tpu.memory_space<vmem>>, vector<1x8x256xf32>
    %80 = vector.shape_cast %79 : vector<1x8x256xf32> to vector<8x256xf32>
    %81 = vector.shape_cast %78 : vector<8x256xf32> to vector<1x8x256xf32>
    tpu.vector_store %arg4[%c0_38, %c32_39, %c0_40], %81 {strides = array<i32>} : memref<1x72x256xf32, #tpu.memory_space<vmem>>, vector<1x8x256xf32>,
    %c0_41 = arith.constant 0 : index
    %c40 = arith.constant 40 : index
    %c0_42 = arith.constant 0 : index
    %82 = vector.load %arg4[%c0_41, %c40, %c0_42] : memref<1x72x256xf32, #tpu.memory_space<vmem>>, vector<1x8x256xf32>
    %83 = vector.shape_cast %82 : vector<1x8x256xf32> to vector<8x256xf32>
    %84 = vector.shape_cast %40 : vector<8x256xf32> to vector<1x8x256xf32>
    %cst_43 = arith.constant dense<0.000000e+00> : vector<8x256xf32>
    %85 = vector.multi_reduction <add>, %84, %cst_43 [0] : vector<1x8x256xf32> to vector<8x256xf32>
    %86 = arith.addf %83, %85 : vector<8x256xf32>
    %c0_44 = arith.constant 0 : index
    %c40_45 = arith.constant 40 : index
    %c0_46 = arith.constant 0 : index
    %87 = vector.load %arg4[%c0_44, %c40_45, %c0_46] : memref<1x72x256xf32, #tpu.memory_space<vmem>>, vector<1x8x256xf32>
    %88 = vector.shape_cast %87 : vector<1x8x256xf32> to vector<8x256xf32>
    %89 = vector.shape_cast %86 : vector<8x256xf32> to vector<1x8x256xf32>
    tpu.vector_store %arg4[%c0_44, %c40_45, %c0_46], %89 {strides = array<i32>} : memref<1x72x256xf32, #tpu.memory_space<vmem>>, vector<1x8x256xf32>,
    %c0_47 = arith.constant 0 : index
    %c48 = arith.constant 48 : index
    %c0_48 = arith.constant 0 : index
    %90 = vector.load %arg4[%c0_47, %c48, %c0_48] : memref<1x72x256xf32, #tpu.memory_space<vmem>>, vector<1x8x256xf32>
    %91 = vector.shape_cast %90 : vector<1x8x256xf32> to vector<8x256xf32>
    %92 = vector.shape_cast %27 : vector<8x256xf32> to vector<1x8x256xf32>
    %cst_49 = arith.constant dense<0.000000e+00> : vector<8x256xf32>
    %93 = vector.multi_reduction <add>, %92, %cst_49 [0] : vector<1x8x256xf32> to vector<8x256xf32>
    %94 = arith.addf %91, %93 : vector<8x256xf32>
    %c0_50 = arith.constant 0 : index
    %c48_51 = arith.constant 48 : index
    %c0_52 = arith.constant 0 : index
    %95 = vector.load %arg4[%c0_50, %c48_51, %c0_52] : memref<1x72x256xf32, #tpu.memory_space<vmem>>, vector<1x8x256xf32>
    %96 = vector.shape_cast %95 : vector<1x8x256xf32> to vector<8x256xf32>
    %97 = vector.shape_cast %94 : vector<8x256xf32> to vector<1x8x256xf32>
    tpu.vector_store %arg4[%c0_50, %c48_51, %c0_52], %97 {strides = array<i32>} : memref<1x72x256xf32, #tpu.memory_space<vmem>>, vector<1x8x256xf32>,
    %c0_53 = arith.constant 0 : index
    %c56 = arith.constant 56 : index
    %c0_54 = arith.constant 0 : index
    %98 = vector.load %arg4[%c0_53, %c56, %c0_54] : memref<1x72x256xf32, #tpu.memory_space<vmem>>, vector<1x8x256xf32>
    %99 = vector.shape_cast %98 : vector<1x8x256xf32> to vector<8x256xf32>
    %100 = vector.shape_cast %41 : vector<8x256xf32> to vector<1x8x256xf32>
    %cst_55 = arith.constant dense<0.000000e+00> : vector<8x256xf32>
    %101 = vector.multi_reduction <add>, %100, %cst_55 [0] : vector<1x8x256xf32> to vector<8x256xf32>
    %102 = arith.addf %99, %101 : vector<8x256xf32>
    %c0_56 = arith.constant 0 : index
    %c56_57 = arith.constant 56 : index
    %c0_58 = arith.constant 0 : index
    %103 = vector.load %arg4[%c0_56, %c56_57, %c0_58] : memref<1x72x256xf32, #tpu.memory_space<vmem>>, vector<1x8x256xf32>
    %104 = vector.shape_cast %103 : vector<1x8x256xf32> to vector<8x256xf32>
    %105 = vector.shape_cast %102 : vector<8x256xf32> to vector<1x8x256xf32>
    tpu.vector_store %arg4[%c0_56, %c56_57, %c0_58], %105 {strides = array<i32>} : memref<1x72x256xf32, #tpu.memory_space<vmem>>, vector<1x8x256xf32>,
    %c0_59 = arith.constant 0 : index
    %c64 = arith.constant 64 : index
    %c0_60 = arith.constant 0 : index
    %106 = vector.load %arg4[%c0_59, %c64, %c0_60] : memref<1x72x256xf32, #tpu.memory_space<vmem>>, vector<1x8x256xf32>
    %107 = vector.shape_cast %106 : vector<1x8x256xf32> to vector<8x256xf32>
    %108 = vector.shape_cast %29 : vector<8x256xf32> to vector<1x8x256xf32>
    %cst_61 = arith.constant dense<0.000000e+00> : vector<8x256xf32>
    %109 = vector.multi_reduction <add>, %108, %cst_61 [0] : vector<1x8x256xf32> to vector<8x256xf32>
    %110 = arith.addf %107, %109 : vector<8x256xf32>
    %c0_62 = arith.constant 0 : index
    %c64_63 = arith.constant 64 : index
    %c0_64 = arith.constant 0 : index
    %111 = vector.load %arg4[%c0_62, %c64_63, %c0_64] : memref<1x72x256xf32, #tpu.memory_space<vmem>>, vector<1x8x256xf32>
    %112 = vector.shape_cast %111 : vector<1x8x256xf32> to vector<8x256xf32>
    %113 = vector.shape_cast %110 : vector<8x256xf32> to vector<1x8x256xf32>
    tpu.vector_store %arg4[%c0_62, %c64_63, %c0_64], %113 {strides = array<i32>} : memref<1x72x256xf32, #tpu.memory_space<vmem>>, vector<1x8x256xf32>,
    return
  }
  func.func @transform_0(%arg0: i32, %arg1: i32) -> (i32, i32) {
    %c1_i32 = arith.constant 1 : i32
    %0 = arith.muli %arg0, %c1_i32 : i32
    %1 = arith.addi %0, %arg1 : i32
    %c0_i32 = arith.constant 0 : i32
    %c0_i32_0 = arith.constant 0 : i32
    return %1, %c0_i32 : i32, i32
  }
  func.func @transform_1(%arg0: i32, %arg1: i32) -> (i32, i32) {
    %c1_i32 = arith.constant 1 : i32
    %0 = arith.muli %arg0, %c1_i32 : i32
    %1 = arith.addi %0, %arg1 : i32
    %c0_i32 = arith.constant 0 : i32
    %c0_i32_0 = arith.constant 0 : i32
    return %1, %c0_i32 : i32, i32
  }
  func.func @transform_2(%arg0: i32, %arg1: i32) -> (i32, i32, i32) {
    %c0_i32 = arith.constant 0 : i32
    %c0_i32_0 = arith.constant 0 : i32
    %c0_i32_1 = arith.constant 0 : i32
    return %arg0, %c0_i32, %c0_i32_0 : i32, i32, i32
  }
}

</mosaic_0001>

<llo_original>
// kernel: tpu_custom_call.1
$region0: #{tpu_custom_call.1}
  #allocation0 [shape = 'u32[]', space=smem, size = 0x4, offset = 0x4, fixed_abs, tag = 'smem constant byte address 0x4 - core index']
  #allocation1 [shape = 'u32[144,128]{1,0:T(1,128)}', space=vmem, size = 0x12000, scoped, tag = 'internal scratch']
  %s0 = inlined_call_operand.hbm [shape: f32[16,256], index: 0, kind: input, shape index: {}]
  %s1 = inlined_call_operand.hbm [shape: f32[16,256], index: 1, kind: input, shape index: {}]
  %s2 = inlined_call_operand.hbm [shape: f32[2,72,256], index: 2, kind: output, shape index: {}]
  %s3 = sld [smem:[#allocation0]]
  $region53: #{tpu_custom_call.1} parent=0
    _
  %s5 = ssub.s32 1, %s3
  %s6 = scalar_select 0, %s5, %s3
  $region1: #{tpu_custom_call.1} parent=0
    #allocation2 [shape = 'u8[16384]{0}', space=vmem, size = 0x4000, scoped, tag = 'input window, operand 0']
    #allocation3 [shape = 's32[2]{0}', space=sflag, size = 0x8, scoped, tag = 'scoped memory for tpu_custom_call.1']
    #allocation4 [shape = 's32[2]{0}', space=sflag, size = 0x8, scoped, tag = 'scoped memory for tpu_custom_call.1']
    #allocation5 [shape = 'u8[16384]{0}', space=vmem, size = 0x4000, scoped, tag = 'input window, operand 1']
    #allocation6 [shape = 's32[2]{0}', space=sflag, size = 0x8, scoped, tag = 'scoped memory for tpu_custom_call.1']
    #allocation7 [shape = 'u8[147456]{0}', space=vmem, size = 0x24000, scoped, tag = 'output window, operand 0']
    %7 = vsyncpa [#allocation3], 0
    %s8 = scalar_lea.sflag [#allocation3], 1
    %9 = vsyncpa %s8, 0
    %10 = vsyncpa [#allocation6], 0
    %s11 = scalar_lea.sflag [#allocation6], 1
    %12 = vsyncpa %s11, 0
    %13 = vsyncpa [#allocation4], 0
    %s14 = scalar_lea.sflag [#allocation4], 1
    %15 = vsyncpa %s14, 0
    loop: start=0, step=1, limit=4
    $region2: #{tpu_custom_call.1} parent=1 // loop_pre_header
      _
    $region3: #{tpu_custom_call.1} parent=1 // loop_header
      %s17 = sphi 0, %s21
      %p18 = scmp.ge.s32.totalorder %s17, 4
      %s24 = sphi 0, %s36
      %s25 = sphi 0, %s32
      %s26 = sphi 0, %s24
      %s27 = sphi 0, %s25
      %s28 = sphi 0, %s26
      %s29 = sphi 0, %s27
      %s41 = sphi 0, %s43
      %s44 = sphi 0, %s41
      %s45 = sphi 0, %s44
      %s61 = sphi 0, %s45
      %s69 = sphi 0, %s71
      %s72 = sphi 0, %s69
      %s73 = sphi 0, %s72
      %s89 = sphi 0, %s73
      %s95 = sphi 0, %s97
      %s98 = sphi 0, %s95
      %s99 = sphi 0, %s98
      %s115 = sphi 0, %s99
    $region4: #{tpu_custom_call.1} parent=1 // loop_header_branch
      %20 = sbr.rel (%p18) target = $region8
    $region5: #{tpu_custom_call.1} parent=1 // loop_body
      %s22 = ssub.s32 %s17, 1
      %s23 = ssub.s32 %s17, 2
      %s30 = sadd.s32 1, %s25
      %p31 = scmp.ge.s32.totalorder %s30, 1
      %s32 = scalar_select %p31, 0, %s30
      %s33 = sadd.s32 1, %s24
      %s34 = scalar_select %p31, %s33, %s24
      %p35 = scmp.ge.s32.totalorder %s34, 2
      %s36 = scalar_select %p35, 0, %s34
      %s37 = sadd.s32 %s24, %s25
      %s38 = sadd.s32 %s36, %s32
      %s39 = ssub.s32 %s37, %s38
      %p40 = scmp.eq.s32.totalorder %s39, 0
      %s42 = sadd.s32 %s41, 1
      %s43 = scalar_select %p40, %s41, %s42
      %p46 = pneg %p40
      %p47 = scmp.eq.s32.totalorder %s17, 1
      %p48 = por %p46, %p47
      %p49 = scmp.ne.s32.totalorder %s41, %s44
      %p50 = scmp.eq.s32.totalorder %s17, 0
      %p51 = por %p49, %p50
      %p52 = scmp.ne.s32.totalorder %s41, %s44
      %p53 = scmp.eq.s32.totalorder %s22, 1
      %p54 = por %p52, %p53
      %p55 = scmp.ne.s32.totalorder %s44, %s45
      %p56 = scmp.eq.s32.totalorder %s22, 0
      %p57 = por %p55, %p56
      %p58 = scmp.ne.s32.totalorder %s44, %s45
      %p59 = scmp.eq.s32.totalorder %s23, 1
      %p60 = por %p58, %p59
      %p62 = scmp.ne.s32.totalorder %s45, %s61
      %p63 = scmp.eq.s32.totalorder %s23, 0
      %p64 = por %p62, %p63
      %s65 = sadd.s32 %s24, %s25
      %s66 = sadd.s32 %s36, %s32
      %s67 = ssub.s32 %s65, %s66
      %p68 = scmp.eq.s32.totalorder %s67, 0
      %s70 = sadd.s32 %s69, 1
      %s71 = scalar_select %p68, %s69, %s70
      %p74 = pneg %p68
      %p75 = scmp.eq.s32.totalorder %s17, 1
      %p76 = por %p74, %p75
      %p77 = scmp.ne.s32.totalorder %s69, %s72
      %p78 = scmp.eq.s32.totalorder %s17, 0
      %p79 = por %p77, %p78
      %p80 = scmp.ne.s32.totalorder %s69, %s72
      %p81 = scmp.eq.s32.totalorder %s22, 1
      %p82 = por %p80, %p81
      %p83 = scmp.ne.s32.totalorder %s72, %s73
      %p84 = scmp.eq.s32.totalorder %s22, 0
      %p85 = por %p83, %p84
      %p86 = scmp.ne.s32.totalorder %s72, %s73
      %p87 = scmp.eq.s32.totalorder %s23, 1
      %p88 = por %p86, %p87
      %p90 = scmp.ne.s32.totalorder %s73, %s89
      %p91 = scmp.eq.s32.totalorder %s23, 0
      %p92 = por %p90, %p91
      %s93 = ssub.s32 %s24, %s36
      %p94 = scmp.eq.s32.totalorder %s93, 0
      %s96 = sadd.s32 %s95, 1
      %s97 = scalar_select %p94, %s95, %s96
      %p100 = pneg %p94
      %p101 = scmp.eq.s32.totalorder %s17, 1
      %p102 = por %p100, %p101
      %p103 = scmp.ne.s32.totalorder %s95, %s98
      %p104 = scmp.eq.s32.totalorder %s17, 0
      %p105 = por %p103, %p104
      %p106 = scmp.ne.s32.totalorder %s95, %s98
      %p107 = scmp.eq.s32.totalorder %s22, 1
      %p108 = por %p106, %p107
      %p109 = scmp.ne.s32.totalorder %s98, %s99
      %p110 = scmp.eq.s32.totalorder %s22, 0
      %p111 = por %p109, %p110
      %p112 = scmp.ne.s32.totalorder %s98, %s99
      %p113 = scmp.eq.s32.totalorder %s23, 1
      %p114 = por %p112, %p113
      %p116 = scmp.ne.s32.totalorder %s99, %s115
      %p117 = scmp.eq.s32.totalorder %s23, 0
      %p118 = por %p116, %p117
      %p119 = scmp.le.s32.totalorder 1, %s17
      %p120 = scmp.lt.s32.totalorder %s17, 3
      %p121 = pnand %p119, %p120
      %p122 = pneg %p121
      // Predicated region
      $region9: #{tpu_custom_call.1} parent=5 // pred_check
        _
      $region10: #{tpu_custom_call.1} parent=5 // pred_check_branch
        %124 = sbr.rel (%p121) target = $region12
      $region11: #{tpu_custom_call.1} parent=5 // pred_region
        %s125 = ssub.s32 %s17, 1
      $region12: #{tpu_custom_call.1} parent=5 // pred_fallthru
        _
      %p126 = scmp.lt.s32.totalorder %s17, 2
      // Predicated region
      $region13: #{tpu_custom_call.1} parent=5 // pred_check
        %p127 = pneg %p126
      $region14: #{tpu_custom_call.1} parent=5 // pred_check_branch
        %129 = sbr.rel (%p127) target = $region16
      $region15: #{tpu_custom_call.1} parent=5 // pred_region
        // Predicated region
        $region17: #{tpu_custom_call.1} parent=15 // pred_check
          %p130 = pneg %p51
        $region18: #{tpu_custom_call.1} parent=15 // pred_check_branch
          %132 = sbr.rel (%p130) target = $region20
        $region19: #{tpu_custom_call.1} parent=15 // pred_region
          %s133 = sand.u32 %s41, 1
          %s134 = scalar_lea.sflag [#allocation3], %s133
          %s135 = sand.u32 %s41, 1
          %s136 = smul.addr %s135, 16
          %s137 = scalar_lea.vmem [#allocation2], %s136
          %s138 = sadd.s32 %s24, %s25
          %s140 = ssub.s32 256, 256
          %141 = vsyncadd %s134, %s140
          %s142 = smul.addr %s138, 2
          %s143 = smul.addr %s142, 128
          %s144 = scalar_lea.hbm %s0, %s143
          %s146 = sshll.u32 %s137, 4
          %s147 = int_to_ptr.vmem [resolvable:$true] %s146
          %149 = dma.hbm_to_vmem [thread:$0]  %s144, 256, %s147, %s134
        $region20: #{tpu_custom_call.1} parent=15 // pred_fallthru
          _
        // Predicated region
        $region21: #{tpu_custom_call.1} parent=15 // pred_check
          %p150 = pneg %p79
        $region22: #{tpu_custom_call.1} parent=15 // pred_check_branch
          %152 = sbr.rel (%p150) target = $region24
        $region23: #{tpu_custom_call.1} parent=15 // pred_region
          %s153 = sand.u32 %s69, 1
          %s154 = scalar_lea.sflag [#allocation6], %s153
          %s155 = sand.u32 %s69, 1
          %s156 = smul.addr %s155, 16
          %s157 = scalar_lea.vmem [#allocation5], %s156
          %s158 = sadd.s32 %s24, %s25
          %s160 = ssub.s32 256, 256
          %161 = vsyncadd %s154, %s160
          %s162 = smul.addr %s158, 2
          %s163 = smul.addr %s162, 128
          %s164 = scalar_lea.hbm %s1, %s163
          %s166 = sshll.u32 %s157, 4
          %s167 = int_to_ptr.vmem [resolvable:$true] %s166
          %169 = dma.hbm_to_vmem [thread:$0]  %s164, 256, %s167, %s154
        $region24: #{tpu_custom_call.1} parent=15 // pred_fallthru
          _
      $region16: #{tpu_custom_call.1} parent=5 // pred_fallthru
        _
      %p170 = scmp.le.s32.totalorder 1, %s17
      %p171 = scmp.lt.s32.totalorder %s17, 3
      %p172 = pnand %p170, %p171
      %p173 = pneg %p172
      // Predicated region
      $region25: #{tpu_custom_call.1} parent=5 // pred_check
        _
      $region26: #{tpu_custom_call.1} parent=5 // pred_check_branch
        %175 = sbr.rel (%p172) target = $region28
      $region27: #{tpu_custom_call.1} parent=5 // pred_region
        %s176 = ssub.s32 %s17, 1
        %s177 = sand.u32 %s44, 1
        %s178 = scalar_lea.sflag [#allocation3], %s177
        %s179 = sand.u32 %s44, 1
        %s180 = smul.addr %s179, 16
        %s181 = scalar_lea.vmem [#allocation2], %s180
        // Predicated region
        $region29: #{tpu_custom_call.1} parent=27 // pred_check
          %p182 = pneg %p57
        $region30: #{tpu_custom_call.1} parent=27 // pred_check_branch
          %184 = sbr.rel (%p182) target = $region32
        $region31: #{tpu_custom_call.1} parent=27 // pred_region
          %185 = dma.done %s178, 256
        $region32: #{tpu_custom_call.1} parent=27 // pred_fallthru
          _
        %s186 = sand.u32 %s72, 1
        %s187 = scalar_lea.sflag [#allocation6], %s186
        %s188 = sand.u32 %s72, 1
        %s189 = smul.addr %s188, 16
        %s190 = scalar_lea.vmem [#allocation5], %s189
        // Predicated region
        $region33: #{tpu_custom_call.1} parent=27 // pred_check
          %p191 = pneg %p85
        $region34: #{tpu_custom_call.1} parent=27 // pred_check_branch
          %193 = sbr.rel (%p191) target = $region36
        $region35: #{tpu_custom_call.1} parent=27 // pred_region
          %194 = dma.done %s187, 256
        $region36: #{tpu_custom_call.1} parent=27 // pred_fallthru
          _
        %s195 = sand.u32 %s44, 1
        %s196 = scalar_lea.sflag [#allocation3], %s195
        %s197 = sand.u32 %s44, 1
        %s198 = smul.addr %s197, 16
        %s199 = scalar_lea.vmem [#allocation2], %s198
        %p200 = pneg %p57
        %p201 = pneg %p54
        %s202 = sand.u32 %s72, 1
        %s203 = scalar_lea.sflag [#allocation6], %s202
        %s204 = sand.u32 %s72, 1
        %s205 = smul.addr %s204, 16
        %s206 = scalar_lea.vmem [#allocation5], %s205
        %p207 = pneg %p85
        %p208 = pneg %p82
        %p209 = pneg %p111
        %p210 = pneg %p108
        %s211 = sand.u32 %s98, 1
        %s212 = scalar_lea.sflag [#allocation4], %s211
        %s213 = sand.u32 %s98, 1
        %s214 = smul.addr %s213, 144
        %s215 = scalar_lea.vmem [#allocation7], %s214
        %s216 = sadd.s32 %s26, %s27
        %s217 = sadd.s32 %s26, %s27
        %p218 = scmp.eq.s32.totalorder %s27, 0
        // Predicated region
        $region37: #{tpu_custom_call.1} parent=27 // pred_check
          %p219 = pneg %p218
        $region38: #{tpu_custom_call.1} parent=27 // pred_check_branch
          %221 = sbr.rel (%p219) target = $region40
        $region39: #{tpu_custom_call.1} parent=27 // pred_region
          %222 = vst [vmem:[%s215] sm:$0xff] 0.0
          %223 = vst [vmem:[%s215 + $0x8] sm:$0xff] 0.0
          %224 = vst [vmem:[%s215 + $0x10] sm:$0xff] 0.0
          %225 = vst [vmem:[%s215 + $0x18] sm:$0xff] 0.0
          %226 = vst [vmem:[%s215 + $0x20] sm:$0xff] 0.0
          %227 = vst [vmem:[%s215 + $0x28] sm:$0xff] 0.0
          %228 = vst [vmem:[%s215 + $0x30] sm:$0xff] 0.0
          %229 = vst [vmem:[%s215 + $0x38] sm:$0xff] 0.0
          %230 = vst [vmem:[%s215 + $0x40] sm:$0xff] 0.0
          %231 = vst [vmem:[%s215 + $0x48] sm:$0xff] 0.0
          %232 = vst [vmem:[%s215 + $0x50] sm:$0xff] 0.0
          %233 = vst [vmem:[%s215 + $0x58] sm:$0xff] 0.0
          %234 = vst [vmem:[%s215 + $0x60] sm:$0xff] 0.0
          %235 = vst [vmem:[%s215 + $0x68] sm:$0xff] 0.0
          %236 = vst [vmem:[%s215 + $0x70] sm:$0xff] 0.0
          %237 = vst [vmem:[%s215 + $0x78] sm:$0xff] 0.0
          %238 = vst [vmem:[%s215 + $0x80] sm:$0xff] 0.0
          %239 = vst [vmem:[%s215 + $0x88] sm:$0xff] 0.0
        $region40: #{tpu_custom_call.1} parent=27 // pred_fallthru
          _
        %v240 = vld [vmem:[%s181] sm:$0xff]
        %v241 = vld [vmem:[%s181 + $0x8] sm:$0xff]
        %v242 = vld [vmem:[%s190] sm:$0xff]
        %v243 = vld [vmem:[%s190 + $0x8] sm:$0xff]
        %v244 = vlog2.pop %v240
        %v245 = vmul.f32 %v244, 0.6931472
        %v246 = vlog2.pop %v241
        %v247 = vmul.f32 %v246, 0.6931472
        %v248 = vmax.f32 %v245, -100.0
        %v249 = vmax.f32 %v247, -100.0
        %v250 = vsub.f32 1.0, %v240
        %v251 = vsub.f32 1.0, %v241
        %v252 = vlog2.pop %v250
        %v253 = vmul.f32 %v252, 0.6931472
        %v254 = vlog2.pop %v251
        %v255 = vmul.f32 %v254, 0.6931472
        %v256 = vmax.f32 %v253, -100.0
        %v257 = vmax.f32 %v255, -100.0
        %v258 = vsub.f32 %v248, %v256
        %v259 = vsub.f32 %v249, %v257
        %v260 = vmul.f32 %v242, %v258
        %v261 = vmul.f32 %v243, %v259
        %v262 = vadd.f32 %v256, %v260
        %v263 = vadd.f32 %v257, %v261
        %264 = vrot.lane.b32.xlu0 %v240, 127
        %v265 = vpop.permute.xlu0 %264
        %266 = vrot.lane.b32.xlu0 %v241, 127
        %v267 = vpop.permute.xlu0 %266
        %v268 = vlaneseq
        %v269 = vand.u32 %v268, 127
        %vm270 = vcmp.lt.s32.totalorder %v269, 127
        %v271 = vsel %vm270, %v265, %v267
        %v272 = vsel %vm270, %v267, %v265
        %273 = vrot.lane.b32.xlu0 %v240, 112
        %v274 = vpop.permute.xlu0 %273
        %275 = vrot.lane.b32.xlu0 %v241, 112
        %v276 = vpop.permute.xlu0 %275
        %vm277 = vcmp.lt.s32.totalorder %v269, 112
        %v278 = vsel %vm277, %v274, %v276
        %v279 = vsel %vm277, %v276, %v274
        %280 = vrot.lane.b32.xlu0 %v278, 127
        %v281 = vpop.permute.xlu0 %280
        %282 = vrot.lane.b32.xlu0 %v279, 127
        %v283 = vpop.permute.xlu0 %282
        %v284 = vsel %vm270, %v281, %v283
        %v285 = vsel %vm270, %v283, %v281
        %286 = vrot.lane.b32.xlu0 %v242, 127
        %v287 = vpop.permute.xlu0 %286
        %288 = vrot.lane.b32.xlu0 %v243, 127
        %v289 = vpop.permute.xlu0 %288
        %v290 = vsel %vm270, %v287, %v289
        %v291 = vsel %vm270, %v289, %v287
        %292 = vrot.lane.b32.xlu0 %v242, 112
        %v293 = vpop.permute.xlu0 %292
        %294 = vrot.lane.b32.xlu0 %v243, 112
        %v295 = vpop.permute.xlu0 %294
        %v296 = vsel %vm277, %v293, %v295
        %v297 = vsel %vm277, %v295, %v293
        %298 = vrot.lane.b32.xlu0 %v296, 127
        %v299 = vpop.permute.xlu0 %298
        %300 = vrot.lane.b32.xlu0 %v297, 127
        %v301 = vpop.permute.xlu0 %300
        %v302 = vsel %vm270, %v299, %v301
        %v303 = vsel %vm270, %v301, %v299
        %v304 = vsub.f32 %v290, %v242
        %v305 = vsub.f32 %v291, %v243
        %v306 = vand.u32 2147483647, %v304
        %v307 = vand.u32 2147483647, %v305
        %v308 = vsub.f32 %v296, %v242
        %v309 = vsub.f32 %v297, %v243
        %v310 = vand.u32 2147483647, %v308
        %v311 = vand.u32 2147483647, %v309
        %v312 = vsub.f32 %v302, %v242
        %v313 = vsub.f32 %v303, %v243
        %v314 = vand.u32 2147483647, %v312
        %v315 = vand.u32 2147483647, %v313
        %v316 = vsub.f32 %v296, %v290
        %v317 = vsub.f32 %v297, %v291
        %v318 = vand.u32 2147483647, %v316
        %v319 = vand.u32 2147483647, %v317
        %v320 = vsub.f32 %v271, %v240
        %v321 = vsub.f32 %v272, %v241
        %v322 = vand.u32 2147483647, %v320
        %v323 = vand.u32 2147483647, %v321
        %v324 = vsub.f32 %v278, %v240
        %v325 = vsub.f32 %v279, %v241
        %v326 = vand.u32 2147483647, %v324
        %v327 = vand.u32 2147483647, %v325
        %v328 = vsub.f32 %v284, %v240
        %v329 = vsub.f32 %v285, %v241
        %v330 = vand.u32 2147483647, %v328
        %v331 = vand.u32 2147483647, %v329
        %v332 = vsub.f32 %v278, %v271
        %v333 = vsub.f32 %v279, %v272
        %v334 = vand.u32 2147483647, %v332
        %v335 = vand.u32 2147483647, %v333
        %v336 = vmul.f32 %v326, %v310
        %v337 = vmul.f32 %v327, %v311
        %v338 = vmul.f32 %v322, %v306
        %v339 = vmul.f32 %v323, %v307
        %v340 = vmul.f32 %v330, %v314
        %v341 = vmul.f32 %v331, %v315
        %v342 = vmul.f32 %v334, %v318
        %v343 = vmul.f32 %v335, %v319
        %v344 = vld [vmem:[%s215] sm:$0xff]
        %v345 = vld [vmem:[%s215 + $0x8] sm:$0xff]
        %v346 = vadd.f32 %v262, 0.0
        %v347 = vadd.f32 %v263, 0.0
        %v348 = vadd.f32 %v344, %v346
        %v349 = vadd.f32 %v345, %v347
        %350 = vst [vmem:[%s215] sm:$0xff] %v348
        %351 = vst [vmem:[%s215 + $0x8] sm:$0xff] %v349
        %v352 = vld [vmem:[%s215 + $0x10] sm:$0xff]
        %v353 = vld [vmem:[%s215 + $0x18] sm:$0xff]
        %v354 = vadd.f32 %v336, 0.0
        %v355 = vadd.f32 %v337, 0.0
        %v356 = vadd.f32 %v352, %v354
        %v357 = vadd.f32 %v353, %v355
        %358 = vst [vmem:[%s215 + $0x10] sm:$0xff] %v356
        %359 = vst [vmem:[%s215 + $0x18] sm:$0xff] %v357
        %v360 = vld [vmem:[%s215 + $0x20] sm:$0xff]
        %v361 = vld [vmem:[%s215 + $0x28] sm:$0xff]
        %v362 = vadd.f32 %v310, 0.0
        %v363 = vadd.f32 %v311, 0.0
        %v364 = vadd.f32 %v360, %v362
        %v365 = vadd.f32 %v361, %v363
        %366 = vst [vmem:[%s215 + $0x20] sm:$0xff] %v364
        %367 = vst [vmem:[%s215 + $0x28] sm:$0xff] %v365
        %v368 = vld [vmem:[%s215 + $0x30] sm:$0xff]
        %v369 = vld [vmem:[%s215 + $0x38] sm:$0xff]
        %v370 = vadd.f32 %v338, 0.0
        %v371 = vadd.f32 %v339, 0.0
        %v372 = vadd.f32 %v368, %v370
        %v373 = vadd.f32 %v369, %v371
        %374 = vst [vmem:[%s215 + $0x30] sm:$0xff] %v372
        %375 = vst [vmem:[%s215 + $0x38] sm:$0xff] %v373
        %v376 = vld [vmem:[%s215 + $0x40] sm:$0xff]
        %v377 = vld [vmem:[%s215 + $0x48] sm:$0xff]
        %v378 = vadd.f32 %v306, 0.0
        %v379 = vadd.f32 %v307, 0.0
        %v380 = vadd.f32 %v376, %v378
        %v381 = vadd.f32 %v377, %v379
        %382 = vst [vmem:[%s215 + $0x40] sm:$0xff] %v380
        %383 = vst [vmem:[%s215 + $0x48] sm:$0xff] %v381
        %v384 = vld [vmem:[%s215 + $0x50] sm:$0xff]
        %v385 = vld [vmem:[%s215 + $0x58] sm:$0xff]
        %v386 = vadd.f32 %v340, 0.0
        %v387 = vadd.f32 %v341, 0.0
        %v388 = vadd.f32 %v384, %v386
        %v389 = vadd.f32 %v385, %v387
        %390 = vst [vmem:[%s215 + $0x50] sm:$0xff] %v388
        %391 = vst [vmem:[%s215 + $0x58] sm:$0xff] %v389
        %v392 = vld [vmem:[%s215 + $0x60] sm:$0xff]
        %v393 = vld [vmem:[%s215 + $0x68] sm:$0xff]
        %v394 = vadd.f32 %v314, 0.0
        %v395 = vadd.f32 %v315, 0.0
        %v396 = vadd.f32 %v392, %v394
        %v397 = vadd.f32 %v393, %v395
        %398 = vst [vmem:[%s215 + $0x60] sm:$0xff] %v396
        %399 = vst [vmem:[%s215 + $0x68] sm:$0xff] %v397
        %v400 = vld [vmem:[%s215 + $0x70] sm:$0xff]
        %v401 = vld [vmem:[%s215 + $0x78] sm:$0xff]
        %v402 = vadd.f32 %v342, 0.0
        %v403 = vadd.f32 %v343, 0.0
        %v404 = vadd.f32 %v400, %v402
        %v405 = vadd.f32 %v401, %v403
        %406 = vst [vmem:[%s215 + $0x70] sm:$0xff] %v404
        %407 = vst [vmem:[%s215 + $0x78] sm:$0xff] %v405
        %v408 = vld [vmem:[%s215 + $0x80] sm:$0xff]
        %v409 = vld [vmem:[%s215 + $0x88] sm:$0xff]
        %v410 = vadd.f32 %v318, 0.0
        %v411 = vadd.f32 %v319, 0.0
        %v412 = vadd.f32 %v408, %v410
        %v413 = vadd.f32 %v409, %v411
        %414 = vst [vmem:[%s215 + $0x80] sm:$0xff] %v412
        %415 = vst [vmem:[%s215 + $0x88] sm:$0xff] %v413
        %s416 = sand.u32 %s98, 1
        %s417 = scalar_lea.sflag [#allocation4], %s416
        %s418 = sand.u32 %s98, 1
        %s419 = smul.addr %s418, 144
        %s420 = scalar_lea.vmem [#allocation7], %s419
        // Predicated region
        $region41: #{tpu_custom_call.1} parent=27 // pred_check
          %p421 = pneg %p108
        $region42: #{tpu_custom_call.1} parent=27 // pred_check_branch
          %423 = sbr.rel (%p421) target = $region44
        $region43: #{tpu_custom_call.1} parent=27 // pred_region
          %s425 = ssub.s32 2304, 2304
          %426 = vsyncadd %s417, %s425
          %s427 = smul.addr %s26, 18
          %s428 = smul.addr %s427, 128
          %s429 = scalar_lea.hbm %s2, %s428
          %s430 = sshll.u32 %s420, 4
          %s431 = int_to_ptr.vmem [resolvable:$true] %s430
          %436 = dma.vmem_to_hbm [thread:$0]  %s431, 2304, %s429, %s417, 256, 256, 16
        $region44: #{tpu_custom_call.1} parent=27 // pred_fallthru
          _
      $region28: #{tpu_custom_call.1} parent=5 // pred_fallthru
        _
      %p437 = scmp.le.s32.totalorder 2, %s17
      // Predicated region
      $region45: #{tpu_custom_call.1} parent=5 // pred_check
        %p438 = pneg %p437
      $region46: #{tpu_custom_call.1} parent=5 // pred_check_branch
        %440 = sbr.rel (%p438) target = $region48
      $region47: #{tpu_custom_call.1} parent=5 // pred_region
        %s441 = ssub.s32 %s17, 2
        // Predicated region
        $region49: #{tpu_custom_call.1} parent=47 // pred_check
          %p442 = pneg %p114
        $region50: #{tpu_custom_call.1} parent=47 // pred_check_branch
          %444 = sbr.rel (%p442) target = $region52
        $region51: #{tpu_custom_call.1} parent=47 // pred_region
          %s445 = sand.u32 %s99, 1
          %s446 = scalar_lea.sflag [#allocation4], %s445
          %s447 = sand.u32 %s99, 1
          %s448 = smul.addr %s447, 144
          %s449 = scalar_lea.vmem [#allocation7], %s448
          %450 = dma.done %s446, 2304
        $region52: #{tpu_custom_call.1} parent=47 // pred_fallthru
          _
      $region48: #{tpu_custom_call.1} parent=5 // pred_fallthru
        _
    $region6: #{tpu_custom_call.1} parent=1 // loop_footer
      %s21 = sadd.s32 1, %s17
    $region7: #{tpu_custom_call.1} parent=1 // loop_footer_branch
      %16 = sbr.rel target = $region3
    $region8: #{tpu_custom_call.1} parent=1 // loop_exit
      _
    %451 = vsyncpa [#allocation3], 1
    %s452 = scalar_lea.sflag [#allocation3], 1
    %453 = vsyncpa %s452, 1
    %454 = vsyncpa [#allocation6], 1
    %s455 = scalar_lea.sflag [#allocation6], 1
    %456 = vsyncpa %s455, 1
    %457 = vsyncpa [#allocation4], 1
    %s458 = scalar_lea.sflag [#allocation4], 1
    %459 = vsyncpa %s458, 1

</llo_original>
